<compile_context>
chip_gen: v7x
topology: tpu7x:2x2x1
jax: 0.10.0
libtpu: 0.0.40
codegen_flags: <defaults>
</compile_context>

<pallas_src>
import jax
import jax.numpy as jnp
from jax.experimental import pallas as pl
from jax.experimental.pallas import tpu as pltpu


def _head_kernel(x_ref, w1_ref, b1_ref, w2_ref, b2_ref, s_ref, prob_ref):
    # hidden = relu(x_packed @ W1_blockdiag + b1_tiled); MXU accumulates in f32.
    h = jnp.dot(x_ref[...], w1_ref[...], preferred_element_type=jnp.float32)
    h = jnp.maximum(h + b1_ref[...], 0.0)
    # logits_packed = hidden @ W2_blockdiag + b2_tiled (f32 accumulation).
    logit = jnp.dot(h.astype(w2_ref.dtype), w2_ref[...],
                    preferred_element_type=jnp.float32)
    logit = logit + b2_ref[...]
    # Segmented softmax over lane groups of size A.  The max is taken per packed row and is
    # therefore shared by all P groups in that row; softmax is shift-invariant within each
    # group, so the result matches F.softmax up to float rounding (per-group underflow would
    # require a cross-group logit spread > ~80 in f32, unreachable for this head).
    m = jnp.max(logit, axis=-1, keepdims=True)
    e = jnp.exp(logit - m)
    denom = jnp.dot(e, s_ref[...], preferred_element_type=jnp.float32)  # per-group sums
    inv = pl.reciprocal(denom, approx=False)  # exact: rows sum to 1 to f32 precision
    prob_ref[...] = (e * inv).astype(prob_ref.dtype)


def _round_up(n, m):
    return ((n + m - 1) // m) * m


def _padded_bytes(rows, cols, itemsize):
    """VMEM footprint of a 2-D buffer with (8,128) layout tiling."""
    return _round_up(max(rows, 1), 8) * _round_up(max(cols, 1), 128) * itemsize


def _vmem_needed(tr, pi, ph, pa, xb):
    resident = (_padded_bytes(pi, ph, xb) + _padded_bytes(1, ph, 4)
                + _padded_bytes(ph, pa, xb) + _padded_bytes(1, pa, 4)
                + _padded_bytes(pa, pa, 4))
    return (2 * _padded_bytes(tr, pi, xb)            # double-buffered x tiles
            + 2 * _padded_bytes(tr, pa, 4)           # double-buffered output tiles
            + 2 * resident                           # weights / biases / group-sum matrix
            + 6 * _padded_bytes(tr, max(ph, pa), 4))  # f32 intermediates headroom


def discrete_head_forward(x, w1, b1, w2, b2, *, compute_dtype=jnp.float32):
    """DiscreteHead forward pass inside one Pallas kernel.

    x:  [B, input_size]
    w1: [input_size, hidden], b1: [1, hidden]
    w2: [hidden, action_size], b2: [1, action_size]
    returns prob: [B, action_size] float32 (the Categorical probabilities)
    """
    B, I = x.shape
    H = w1.shape[1]
    A = w2.shape[1]

    use_bf16 = compute_dtype == jnp.bfloat16
    op_dtype = jnp.bfloat16 if use_bf16 else jnp.float32
    xb = jnp.dtype(op_dtype).itemsize

    # ---- lane packing: P batch rows per 128-lane row via block-diagonal weights ----
    P = max(1, 128 // I)
    Bp = _round_up(B, 8 * P)            # pad batch so packed rows are a multiple of 8
    R = Bp // P                         # packed rows
    PI, PH, PA = P * I, P * H, P * A

    x_pad = jnp.zeros((Bp, I), op_dtype).at[:B].set(x.astype(op_dtype))
    x_packed = x_pad.reshape(R, PI)

    eye = jnp.eye(P, dtype=jnp.float32)
    w1p = jnp.kron(eye, w1.astype(jnp.float32)).astype(op_dtype)    # [P*I, P*H] block-diag
    w2p = jnp.kron(eye, w2.astype(jnp.float32)).astype(op_dtype)    # [P*H, P*A] block-diag
    b1p = jnp.tile(b1.astype(jnp.float32).reshape(1, H), (1, P))    # [1, P*H]
    b2p = jnp.tile(b2.astype(jnp.float32).reshape(1, A), (1, P))    # [1, P*A]
    seg = jnp.kron(eye, jnp.ones((A, A), jnp.float32))              # [P*A, P*A] group-sum

    # ---- batch tiling: large tiles to amortize per-step overhead, >=2 steps for v7x ----
    MAX_TR = 4096                 # packed rows per tile (= 16384 batch rows at I=32)
    VMEM_BUDGET = 40 << 20        # working set target; fits v7x's 64 MiB physical VMEM

    tr = min(MAX_TR, max(8, _round_up(pl.cdiv(R, 2), 8)))
    while tr > 8 and _vmem_needed(tr, PI, PH, PA, xb) > VMEM_BUDGET:
        tr = max(8, _round_up(tr // 2, 8))
    grid = (pl.cdiv(R, tr),)

    vmem_limit = int(min(48 << 20,
                         max(32 << 20, 3 * _vmem_needed(tr, PI, PH, PA, xb) // 2)))

    cost = pl.CostEstimate(
        flops=2 * R * (PI * PH + PH * PA + PA * PA),
        transcendentals=R * PA,
        bytes_accessed=(R * PI * xb + (PI * PH + PH * PA) * xb
                        + (PH + PA + PA * PA) * 4 + R * PA * 4),
    )

    prob_packed = pl.pallas_call(
        _head_kernel,
        out_shape=jax.ShapeDtypeStruct((R, PA), jnp.float32),
        grid=grid,
        in_specs=[
            pl.BlockSpec((tr, PI), lambda i: (i, 0)),   # lane-dense batch-tiled x (pipelined)
            pl.BlockSpec((PI, PH), lambda i: (0, 0)),   # block-diag weights stay VMEM-resident
            pl.BlockSpec((1, PH), lambda i: (0, 0)),
            pl.BlockSpec((PH, PA), lambda i: (0, 0)),
            pl.BlockSpec((1, PA), lambda i: (0, 0)),
            pl.BlockSpec((PA, PA), lambda i: (0, 0)),   # segmented-softmax group-sum matrix
        ],
        out_specs=pl.BlockSpec((tr, PA), lambda i: (i, 0)),
        compiler_params=pltpu.CompilerParams(
            dimension_semantics=("parallel",),          # shard batch tiles across TCs on v7x
            vmem_limit_bytes=vmem_limit,
        ),
        cost_estimate=cost,
    )(x_packed, w1p, b1p, w2p, b2p, seg)

    # Row-major reshape [B/P, P*A] -> [Bp, A] is the same flat layout; drop padded rows.
    return prob_packed.reshape(Bp, A)[:B]


def init_params(key, input_size, action_size, hidden_size=8):
    # Deterministic init mimicking nn.Linear's uniform(-1/sqrt(fan_in), 1/sqrt(fan_in)).
    k1, k2, k3, k4 = jax.random.split(key, 4)
    bound1 = 1.0 / jnp.sqrt(jnp.float32(input_size))
    bound2 = 1.0 / jnp.sqrt(jnp.float32(hidden_size))
    w1 = jax.random.uniform(k1, (input_size, hidden_size), jnp.float32, -bound1, bound1)
    b1 = jax.random.uniform(k2, (1, hidden_size), jnp.float32, -bound1, bound1)
    w2 = jax.random.uniform(k3, (hidden_size, action_size), jnp.float32, -bound2, bound2)
    b2 = jax.random.uniform(k4, (1, action_size), jnp.float32, -bound2, bound2)
    return w1, b1, w2, b2


def _reference(x, w1, b1, w2, b2):
    h = jnp.maximum(x @ w1 + b1, 0.0)
    logit = h @ w2 + b2
    return jax.nn.softmax(logit, axis=-1)


# TODO(synk): torch.distributions.Categorical itself (sampling / log_prob) is a host-side
# distribution object with no kernel equivalent; the kernel returns the `prob` tensor.

if __name__ == "__main__":
    key = jax.random.PRNGKey(0)
    k_x, k_x2, k_p = jax.random.split(key, 3)

    input_size = 32
    action_size = 4
    w1, b1, w2, b2 = init_params(k_p, input_size, action_size)

    # Small batch (matches the PyTorch module's typical usage).
    x_small = jax.random.normal(k_x, (2, input_size), jnp.float32)
    ref_small = _reference(x_small, w1, b1, w2, b2)
    prob_small = jax.block_until_ready(discrete_head_forward(x_small, w1, b1, w2, b2))
    assert prob_small.shape == (2, action_size)
    assert jnp.allclose(prob_small, ref_small, atol=1e-5, rtol=1e-5)
    assert jnp.allclose(jnp.sum(prob_small, axis=-1), 1.0, atol=1e-5)

    # Larger ragged batch: exercises batch padding, a multi-step grid and a partial last tile.
    x_big = jax.random.normal(k_x2, (333, input_size), jnp.float32)
    ref_big = _reference(x_big, w1, b1, w2, b2)
    prob_big = jax.block_until_ready(discrete_head_forward(x_big, w1, b1, w2, b2))
    assert prob_big.shape == (333, action_size)
    assert jnp.allclose(prob_big, ref_big, atol=1e-5, rtol=1e-5)
    assert jnp.allclose(jnp.sum(prob_big, axis=-1), 1.0, atol=1e-5)

    # bf16 operand path (halves x HBM traffic on v6e/v7x); accumulation and softmax stay f32
    # and the reciprocal is exact, so rows still sum to 1 to f32 precision.
    prob_bf16 = jax.block_until_ready(
        discrete_head_forward(x_big, w1, b1, w2, b2, compute_dtype=jnp.bfloat16))
    assert prob_bf16.shape == (333, action_size)
    assert jnp.allclose(prob_bf16, ref_big, atol=5e-2, rtol=5e-2)
    assert jnp.allclose(jnp.sum(prob_bf16, axis=-1), 1.0, atol=1e-4)

    print("KERNEL_OK")
</pallas_src>

<mosaic_0001>
module attributes {stable_mosaic.version = 11 : i64} {
  func.func @_head_kernel(%arg0: i32, %arg1: memref<8x128xf32, #tpu.memory_space<vmem>>, %arg2: memref<128x32xf32, #tpu.memory_space<vmem>>, %arg3: memref<1x32xf32, #tpu.memory_space<vmem>>, %arg4: memref<32x16xf32, #tpu.memory_space<vmem>>, %arg5: memref<1x16xf32, #tpu.memory_space<vmem>>, %arg6: memref<16x16xf32, #tpu.memory_space<vmem>>, %arg7: memref<8x16xf32, #tpu.memory_space<vmem>>) attributes {dimension_semantics = [#tpu.dimension_semantics<parallel>], iteration_bounds = array<i64: 1>, scalar_prefetch = 0 : i64, scratch_operands = 0 : i64, tpu.core_type = #tpu.core_type<tc>, window_params = [{transform_indices = @transform_0, window_bounds = array<i64: 8, 128>}, {pipeline_mode = #tpu.pipeline_mode<synchronous>, transform_indices = @transform_1, window_bounds = array<i64: 128, 32>}, {pipeline_mode = #tpu.pipeline_mode<synchronous>, transform_indices = @transform_2, window_bounds = array<i64: 1, 32>}, {pipeline_mode = #tpu.pipeline_mode<synchronous>, transform_indices = @transform_3, window_bounds = array<i64: 32, 16>}, {pipeline_mode = #tpu.pipeline_mode<synchronous>, transform_indices = @transform_4, window_bounds = array<i64: 1, 16>}, {pipeline_mode = #tpu.pipeline_mode<synchronous>, transform_indices = @transform_5, window_bounds = array<i64: 16, 16>}, {transform_indices = @transform_6, window_bounds = array<i64: 8, 16>}]} {
    %c0 = arith.constant 0 : index
    %c0_0 = arith.constant 0 : index
    %0 = vector.load %arg1[%c0, %c0_0] : memref<8x128xf32, #tpu.memory_space<vmem>>, vector<8x128xf32>
    %c0_1 = arith.constant 0 : index
    %c0_2 = arith.constant 0 : index
    %1 = vector.load %arg2[%c0_1, %c0_2] : memref<128x32xf32, #tpu.memory_space<vmem>>, vector<128x32xf32>
    %cst = arith.constant dense<0.000000e+00> : vector<8x32xf32>
    %2 = tpu.matmul %0, %1, %cst {dimension_numbers = #tpu.dot_dimension_numbers<[1], [0], [0], [1], [0, 0, 1, 1], [], []>} : vector<8x128xf32>, vector<128x32xf32>, vector<8x32xf32> -> vector<8x32xf32>
    %c0_3 = arith.constant 0 : index
    %c0_4 = arith.constant 0 : index
    %3 = vector.load %arg3[%c0_3, %c0_4] : memref<1x32xf32, #tpu.memory_space<vmem>>, vector<1x32xf32>
    %4 = vector.broadcast %3 : vector<1x32xf32> to vector<8x32xf32>
    %5 = arith.addf %2, %4 : vector<8x32xf32>
    %cst_5 = arith.constant 0.000000e+00 : f32
    %6 = vector.broadcast %cst_5 : f32 to vector<8x32xf32>
    %7 = arith.maximumf %5, %6 : vector<8x32xf32>
    %c0_6 = arith.constant 0 : index
    %c0_7 = arith.constant 0 : index
    %8 = vector.load %arg4[%c0_6, %c0_7] : memref<32x16xf32, #tpu.memory_space<vmem>>, vector<32x16xf32>
    %cst_8 = arith.constant dense<0.000000e+00> : vector<8x16xf32>
    %9 = tpu.matmul %7, %8, %cst_8 {dimension_numbers = #tpu.dot_dimension_numbers<[1], [0], [0], [1], [0, 0, 1, 1], [], []>} : vector<8x32xf32>, vector<32x16xf32>, vector<8x16xf32> -> vector<8x16xf32>
    %c0_9 = arith.constant 0 : index
    %c0_10 = arith.constant 0 : index
    %10 = vector.load %arg5[%c0_9, %c0_10] : memref<1x16xf32, #tpu.memory_space<vmem>>, vector<1x16xf32>
    %11 = vector.broadcast %10 : vector<1x16xf32> to vector<8x16xf32>
    %12 = arith.addf %9, %11 : vector<8x16xf32>
    %cst_11 = arith.constant dense<0xFF800000> : vector<8xf32>
    %13 = vector.multi_reduction <maximumf>, %12, %cst_11 [1] : vector<8x16xf32> to vector<8xf32>
    %14 = vector.shape_cast %13 : vector<8xf32> to vector<8x1xf32>
    %15 = vector.broadcast %14 : vector<8x1xf32> to vector<8x16xf32>
    %16 = arith.subf %12, %15 : vector<8x16xf32>
    %17 = math.exp %16 : vector<8x16xf32>
    %c0_12 = arith.constant 0 : index
    %c0_13 = arith.constant 0 : index
    %18 = vector.load %arg6[%c0_12, %c0_13] : memref<16x16xf32, #tpu.memory_space<vmem>>, vector<16x16xf32>
    %cst_14 = arith.constant dense<0.000000e+00> : vector<8x16xf32>
    %19 = tpu.matmul %17, %18, %cst_14 {dimension_numbers = #tpu.dot_dimension_numbers<[1], [0], [0], [1], [0, 0, 1, 1], [], []>} : vector<8x16xf32>, vector<16x16xf32>, vector<8x16xf32> -> vector<8x16xf32>
    %20 = tpu.reciprocal %19 : vector<8x16xf32> -> vector<8x16xf32>
    %21 = arith.mulf %17, %20 : vector<8x16xf32>
    %c0_15 = arith.constant 0 : index
    %c0_16 = arith.constant 0 : index
    %22 = vector.load %arg7[%c0_15, %c0_16] : memref<8x16xf32, #tpu.memory_space<vmem>>, vector<8x16xf32>
    tpu.vector_store %arg7[%c0_15, %c0_16], %21 {strides = array<i32>} : memref<8x16xf32, #tpu.memory_space<vmem>>, vector<8x16xf32>,
    return
  }
  func.func @transform_0(%arg0: i32) -> (i32, i32) {
    %c0_i32 = arith.constant 0 : i32
    %c0_i32_0 = arith.constant 0 : i32
    return %arg0, %c0_i32 : i32, i32
  }
  func.func @transform_1(%arg0: i32) -> (i32, i32) {
    %c0_i32 = arith.constant 0 : i32
    %c0_i32_0 = arith.constant 0 : i32
    %c0_i32_1 = arith.constant 0 : i32
    return %c0_i32, %c0_i32_0 : i32, i32
  }
  func.func @transform_2(%arg0: i32) -> (i32, i32) {
    %c0_i32 = arith.constant 0 : i32
    %c0_i32_0 = arith.constant 0 : i32
    %c0_i32_1 = arith.constant 0 : i32
    return %c0_i32, %c0_i32_0 : i32, i32
  }
  func.func @transform_3(%arg0: i32) -> (i32, i32) {
    %c0_i32 = arith.constant 0 : i32
    %c0_i32_0 = arith.constant 0 : i32
    %c0_i32_1 = arith.constant 0 : i32
    return %c0_i32, %c0_i32_0 : i32, i32
  }
  func.func @transform_4(%arg0: i32) -> (i32, i32) {
    %c0_i32 = arith.constant 0 : i32
    %c0_i32_0 = arith.constant 0 : i32
    %c0_i32_1 = arith.constant 0 : i32
    return %c0_i32, %c0_i32_0 : i32, i32
  }
  func.func @transform_5(%arg0: i32) -> (i32, i32) {
    %c0_i32 = arith.constant 0 : i32
    %c0_i32_0 = arith.constant 0 : i32
    %c0_i32_1 = arith.constant 0 : i32
    return %c0_i32, %c0_i32_0 : i32, i32
  }
  func.func @transform_6(%arg0: i32) -> (i32, i32) {
    %c0_i32 = arith.constant 0 : i32
    %c0_i32_0 = arith.constant 0 : i32
    return %arg0, %c0_i32 : i32, i32
  }
}

</mosaic_0001>

<llo_original>
// kernel: tpu_custom_call.1
$region0: #{tpu_custom_call.1}
  #allocation0 [shape = 'u32[]', space=smem, size = 0x4, offset = 0x4, fixed_abs, tag = 'smem constant byte address 0x4 - core index']
  #allocation1 [shape = 'u32[144,128]{1,0:T(1,128)}', space=vmem, size = 0x12000, scoped, tag = 'internal scratch']
  %s0 = inlined_call_operand.vmem [shape: f32[8,128], index: 0, kind: input, shape index: {}]
  %s1 = inlined_call_operand.vmem [shape: f32[128,32], index: 1, kind: input, shape index: {}]
  %s2 = inlined_call_operand.vmem [shape: f32[1,32], index: 2, kind: input, shape index: {}]
  %s3 = inlined_call_operand.vmem [shape: f32[32,16], index: 3, kind: input, shape index: {}]
  %s4 = inlined_call_operand.vmem [shape: f32[1,16], index: 4, kind: input, shape index: {}]
  %s5 = inlined_call_operand.vmem [shape: f32[16,16], index: 5, kind: input, shape index: {}]
  %s6 = inlined_call_operand.hbm [shape: f32[8,16], index: 6, kind: output, shape index: {}]
  %s7 = sld [smem:[#allocation0]]
  $region34: #{tpu_custom_call.1} parent=0
    _
  %s9 = ssub.s32 1, %s7
  %s10 = scalar_select 0, %s9, %s7
  $region1: #{tpu_custom_call.1} parent=0
    #allocation2 [shape = 'u8[4096]{0}', space=vmem, size = 0x1000, scoped, tag = 'output window, operand 0, single buffered']
    #allocation3 [shape = 's32[1]{0}', space=sflag, size = 0x4, scoped, tag = 'scoped memory for tpu_custom_call.1']
    %11 = vsyncpa [#allocation3], 0
    // Predicated region
    $region2: #{tpu_custom_call.1} parent=1 // pred_check
      _
    $region3: #{tpu_custom_call.1} parent=1 // pred_check_branch
      %13 = sbr.rel (0) target = $region5
    $region4: #{tpu_custom_call.1} parent=1 // pred_region
      _
    $region5: #{tpu_custom_call.1} parent=1 // pred_fallthru
      _
    // Predicated region
    $region6: #{tpu_custom_call.1} parent=1 // pred_check
      _
    $region7: #{tpu_custom_call.1} parent=1 // pred_check_branch
      %15 = sbr.rel (0) target = $region9
    $region8: #{tpu_custom_call.1} parent=1 // pred_region
      _
    $region9: #{tpu_custom_call.1} parent=1 // pred_fallthru
      _
    // Predicated region
    $region10: #{tpu_custom_call.1} parent=1 // pred_check
      _
    $region11: #{tpu_custom_call.1} parent=1 // pred_check_branch
      %17 = sbr.rel (0) target = $region13
    $region12: #{tpu_custom_call.1} parent=1 // pred_region
      _
    $region13: #{tpu_custom_call.1} parent=1 // pred_fallthru
      _
    // Predicated region
    $region14: #{tpu_custom_call.1} parent=1 // pred_check
      _
    $region15: #{tpu_custom_call.1} parent=1 // pred_check_branch
      %19 = sbr.rel (0) target = $region17
    $region16: #{tpu_custom_call.1} parent=1 // pred_region
      _
    $region17: #{tpu_custom_call.1} parent=1 // pred_fallthru
      _
    // Predicated region
    $region18: #{tpu_custom_call.1} parent=1 // pred_check
      _
    $region19: #{tpu_custom_call.1} parent=1 // pred_check_branch
      %21 = sbr.rel (0) target = $region21
    $region20: #{tpu_custom_call.1} parent=1 // pred_region
      _
    $region21: #{tpu_custom_call.1} parent=1 // pred_fallthru
      _
    // Predicated region
    $region22: #{tpu_custom_call.1} parent=1 // pred_check
      _
    $region23: #{tpu_custom_call.1} parent=1 // pred_check_branch
      %23 = sbr.rel (0) target = $region25
    $region24: #{tpu_custom_call.1} parent=1 // pred_region
      _
    $region25: #{tpu_custom_call.1} parent=1 // pred_fallthru
      _
    %v24 = vld [vmem:[%s0] sm:$0xff]
    %v25 = vld [vmem:[%s1] sm:$0xff]
    %v26 = vld [vmem:[%s1 + $0x8] sm:$0xff]
    %v27 = vld [vmem:[%s1 + $0x10] sm:$0xff]
    %v28 = vld [vmem:[%s1 + $0x18] sm:$0xff]
    %v29 = vld [vmem:[%s1 + $0x20] sm:$0xff]
    %v30 = vld [vmem:[%s1 + $0x28] sm:$0xff]
    %v31 = vld [vmem:[%s1 + $0x30] sm:$0xff]
    %v32 = vld [vmem:[%s1 + $0x38] sm:$0xff]
    %v33 = vld [vmem:[%s1 + $0x40] sm:$0xff]
    %v34 = vld [vmem:[%s1 + $0x48] sm:$0xff]
    %v35 = vld [vmem:[%s1 + $0x50] sm:$0xff]
    %v36 = vld [vmem:[%s1 + $0x58] sm:$0xff]
    %v37 = vld [vmem:[%s1 + $0x60] sm:$0xff]
    %v38 = vld [vmem:[%s1 + $0x68] sm:$0xff]
    %v39 = vld [vmem:[%s1 + $0x70] sm:$0xff]
    %v40 = vld [vmem:[%s1 + $0x78] sm:$0xff]
    %v41 = vld [vmem:[%s2] sm:$0x1]
    %v43 = vlaneseq
    %v44 = vshrl.u32 %v43, 7
    %v45 = vsub.s32 0, %v44
    %v46 = vrot.slane %v41, %v45
    %48 = vmatprep.subr.mxu0 0.0
    %49 = vmatpush1.msra.mxu0 %v25
    %50 = vmatprep.subr.mxu0 0.0
    %51 = vmatpush1.msra.mxu0 %v26
    %52 = vmatprep.subr.mxu0 0.0
    %53 = vmatpush1.msra.mxu0 %v27
    %54 = vmatprep.subr.mxu0 0.0
    %55 = vmatpush1.msra.mxu0 %v28
    %56 = vmatprep.subr.mxu0 0.0
    %57 = vmatpush1.msra.mxu0 %v29
    %58 = vmatprep.subr.mxu0 0.0
    %59 = vmatpush1.msra.mxu0 %v30
    %60 = vmatprep.subr.mxu0 0.0
    %61 = vmatpush1.msra.mxu0 %v31
    %62 = vmatprep.subr.mxu0 0.0
    %63 = vmatpush1.msra.mxu0 %v32
    %64 = vmatprep.subr.mxu0 0.0
    %65 = vmatpush1.msra.mxu0 %v33
    %66 = vmatprep.subr.mxu0 0.0
    %67 = vmatpush1.msra.mxu0 %v34
    %68 = vmatprep.subr.mxu0 0.0
    %69 = vmatpush1.msra.mxu0 %v35
    %70 = vmatprep.subr.mxu0 0.0
    %71 = vmatpush1.msra.mxu0 %v36
    %72 = vmatprep.subr.mxu0 0.0
    %73 = vmatpush1.msra.mxu0 %v37
    %74 = vmatprep.subr.mxu0 0.0
    %75 = vmatpush1.msra.mxu0 %v38
    %76 = vmatprep.subr.mxu0 0.0
    %77 = vmatpush1.msra.mxu0 %v39
    %78 = vmatprep.subr.mxu0 0.0
    %79 = vmatpush1.msra.mxu0 %v40
    %80 = vmatprep.subr.mxu0 0.0
    %81 = vmatpush1.msra.mxu0 0.0
    %82 = vmatprep.subr.mxu0 0.0
    %83 = vmatpush1.msra.mxu0 0.0
    %84 = vmatprep.subr.mxu0 0.0
    %85 = vmatpush1.msra.mxu0 0.0
    %86 = vmatprep.subr.mxu0 0.0
    %87 = vmatpush1.msra.mxu0 0.0
    %88 = vmatprep.subr.mxu0 0.0
    %89 = vmatpush1.msra.mxu0 0.0
    %90 = vmatprep.subr.mxu0 0.0
    %91 = vmatpush1.msra.mxu0 0.0
    %92 = vmatprep.subr.mxu0 0.0
    %93 = vmatpush1.msra.mxu0 0.0
    %94 = vmatprep.subr.mxu0 0.0
    %95 = vmatpush1.msra.mxu0 0.0
    %96 = vmatprep.subr.mxu0 0.0
    %97 = vmatpush1.msra.mxu0 0.0
    %98 = vmatprep.subr.mxu0 0.0
    %99 = vmatpush1.msra.mxu0 0.0
    %100 = vmatprep.subr.mxu0 0.0
    %101 = vmatpush1.msra.mxu0 0.0
    %102 = vmatprep.subr.mxu0 0.0
    %103 = vmatpush1.msra.mxu0 0.0
    %104 = vmatprep.subr.mxu0 0.0
    %105 = vmatpush1.msra.mxu0 0.0
    %106 = vmatprep.subr.mxu0 0.0
    %107 = vmatpush1.msra.mxu0 0.0
    %108 = vmatprep.subr.mxu0 0.0
    %109 = vmatpush1.msra.mxu0 0.0
    %110 = vmatprep.subr.mxu0 0.0
    %111 = vmatpush1.msra.mxu0 0.0
    %112 = vmatprep.mubr.f32.mxu0 0.0
    %113 = vmatmul.mubr.f32.gmra.mrb[0].mxu0 %v24
    %v114 = vpop.f32.mrb[0].mxu0
    %v115 = vadd.f32 %v46, %v114
    %v116 = vpop.f32.mrb[0].mxu0
    %117 = vdwg.mxu0
    %v118 = vmax.f32 %v115, 0.0
    %v119 = vld [vmem:[%s3] sm:$0xff]
    %v120 = vld [vmem:[%s3 + $0x8] sm:$0xff]
    %v121 = vld [vmem:[%s3 + $0x10] sm:$0xff]
    %v122 = vld [vmem:[%s3 + $0x18] sm:$0xff]
    %v123 = vld [vmem:[%s4] sm:$0x1]
    %v125 = vlaneseq
    %v126 = vshrl.u32 %v125, 7
    %v127 = vsub.s32 0, %v126
    %v128 = vrot.slane %v123, %v127
    %vm130 = vcmask 261120
    %v132 = vsel %vm130, %v118, 0
    %134 = vmatprep.subr.mxu0 0.0
    %135 = vmatpush1.msra.mxu0 %v119
    %136 = vmatprep.subr.mxu0 0.0
    %137 = vmatpush1.msra.mxu0 %v120
    %138 = vmatprep.subr.mxu0 0.0
    %139 = vmatpush1.msra.mxu0 %v121
    %140 = vmatprep.subr.mxu0 0.0
    %141 = vmatpush1.msra.mxu0 %v122
    %142 = vmatprep.subr.mxu0 0.0
    %143 = vmatpush1.msra.mxu0 0.0
    %144 = vmatprep.subr.mxu0 0.0
    %145 = vmatpush1.msra.mxu0 0.0
    %146 = vmatprep.subr.mxu0 0.0
    %147 = vmatpush1.msra.mxu0 0.0
    %148 = vmatprep.subr.mxu0 0.0
    %149 = vmatpush1.msra.mxu0 0.0
    %150 = vmatprep.subr.mxu0 0.0
    %151 = vmatpush1.msra.mxu0 0.0
    %152 = vmatprep.subr.mxu0 0.0
    %153 = vmatpush1.msra.mxu0 0.0
    %154 = vmatprep.subr.mxu0 0.0
    %155 = vmatpush1.msra.mxu0 0.0
    %156 = vmatprep.subr.mxu0 0.0
    %157 = vmatpush1.msra.mxu0 0.0
    %158 = vmatprep.subr.mxu0 0.0
    %159 = vmatpush1.msra.mxu0 0.0
    %160 = vmatprep.subr.mxu0 0.0
    %161 = vmatpush1.msra.mxu0 0.0
    %162 = vmatprep.subr.mxu0 0.0
    %163 = vmatpush1.msra.mxu0 0.0
    %164 = vmatprep.subr.mxu0 0.0
    %165 = vmatpush1.msra.mxu0 0.0
    %166 = vmatprep.subr.mxu0 0.0
    %167 = vmatpush1.msra.mxu0 0.0
    %168 = vmatprep.subr.mxu0 0.0
    %169 = vmatpush1.msra.mxu0 0.0
    %170 = vmatprep.subr.mxu0 0.0
    %171 = vmatpush1.msra.mxu0 0.0
    %172 = vmatprep.subr.mxu0 0.0
    %173 = vmatpush1.msra.mxu0 0.0
    %174 = vmatprep.subr.mxu0 0.0
    %175 = vmatpush1.msra.mxu0 0.0
    %176 = vmatprep.subr.mxu0 0.0
    %177 = vmatpush1.msra.mxu0 0.0
    %178 = vmatprep.subr.mxu0 0.0
    %179 = vmatpush1.msra.mxu0 0.0
    %180 = vmatprep.subr.mxu0 0.0
    %181 = vmatpush1.msra.mxu0 0.0
    %182 = vmatprep.subr.mxu0 0.0
    %183 = vmatpush1.msra.mxu0 0.0
    %184 = vmatprep.subr.mxu0 0.0
    %185 = vmatpush1.msra.mxu0 0.0
    %186 = vmatprep.subr.mxu0 0.0
    %187 = vmatpush1.msra.mxu0 0.0
    %188 = vmatprep.subr.mxu0 0.0
    %189 = vmatpush1.msra.mxu0 0.0
    %190 = vmatprep.subr.mxu0 0.0
    %191 = vmatpush1.msra.mxu0 0.0
    %192 = vmatprep.subr.mxu0 0.0
    %193 = vmatpush1.msra.mxu0 0.0
    %194 = vmatprep.subr.mxu0 0.0
    %195 = vmatpush1.msra.mxu0 0.0
    %196 = vmatprep.subr.mxu0 0.0
    %197 = vmatpush1.msra.mxu0 0.0
    %198 = vmatprep.mubr.f32.mxu0 0.0
    %199 = vmatmul.mubr.f32.gmra.mrb[0].mxu0 %v132
    %v200 = vpop.f32.mrb[0].mxu0
    %v201 = vadd.f32 %v128, %v200
    %v202 = vpop.f32.mrb[0].mxu0
    %203 = vdwg.mxu0
    %vm204 = vcmask 130048
    %v205 = vsel %vm204, %v201, -inf
    %206 = vmax.xlane.f32.xlu0 %v205
    %v207 = vpop.xlane.xlu0 %206
    %v208 = vsub.f32 %v201, %v207
    %v209 = vmul.f32 %v208, 1.442695
    %v210 = vpow.pop %v209
    %v211 = vld [vmem:[%s5] sm:$0xff]
    %v212 = vld [vmem:[%s5 + $0x8] sm:$0xff]
    %v214 = vsel %vm204, %v210, 0
    %216 = vmatprep.subr.mxu0 0.0
    %217 = vmatpush1.msra.mxu0 %v211
    %218 = vmatprep.subr.mxu0 0.0
    %219 = vmatpush1.msra.mxu0 %v212
    %220 = vmatprep.subr.mxu0 0.0
    %221 = vmatpush1.msra.mxu0 0.0
    %222 = vmatprep.subr.mxu0 0.0
    %223 = vmatpush1.msra.mxu0 0.0
    %224 = vmatprep.subr.mxu0 0.0
    %225 = vmatpush1.msra.mxu0 0.0
    %226 = vmatprep.subr.mxu0 0.0
    %227 = vmatpush1.msra.mxu0 0.0
    %228 = vmatprep.subr.mxu0 0.0
    %229 = vmatpush1.msra.mxu0 0.0
    %230 = vmatprep.subr.mxu0 0.0
    %231 = vmatpush1.msra.mxu0 0.0
    %232 = vmatprep.subr.mxu0 0.0
    %233 = vmatpush1.msra.mxu0 0.0
    %234 = vmatprep.subr.mxu0 0.0
    %235 = vmatpush1.msra.mxu0 0.0
    %236 = vmatprep.subr.mxu0 0.0
    %237 = vmatpush1.msra.mxu0 0.0
    %238 = vmatprep.subr.mxu0 0.0
    %239 = vmatpush1.msra.mxu0 0.0
    %240 = vmatprep.subr.mxu0 0.0
    %241 = vmatpush1.msra.mxu0 0.0
    %242 = vmatprep.subr.mxu0 0.0
    %243 = vmatpush1.msra.mxu0 0.0
    %244 = vmatprep.subr.mxu0 0.0
    %245 = vmatpush1.msra.mxu0 0.0
    %246 = vmatprep.subr.mxu0 0.0
    %247 = vmatpush1.msra.mxu0 0.0
    %248 = vmatprep.subr.mxu0 0.0
    %249 = vmatpush1.msra.mxu0 0.0
    %250 = vmatprep.subr.mxu0 0.0
    %251 = vmatpush1.msra.mxu0 0.0
    %252 = vmatprep.subr.mxu0 0.0
    %253 = vmatpush1.msra.mxu0 0.0
    %254 = vmatprep.subr.mxu0 0.0
    %255 = vmatpush1.msra.mxu0 0.0
    %256 = vmatprep.subr.mxu0 0.0
    %257 = vmatpush1.msra.mxu0 0.0
    %258 = vmatprep.subr.mxu0 0.0
    %259 = vmatpush1.msra.mxu0 0.0
    %260 = vmatprep.subr.mxu0 0.0
    %261 = vmatpush1.msra.mxu0 0.0
    %262 = vmatprep.subr.mxu0 0.0
    %263 = vmatpush1.msra.mxu0 0.0
    %264 = vmatprep.subr.mxu0 0.0
    %265 = vmatpush1.msra.mxu0 0.0
    %266 = vmatprep.subr.mxu0 0.0
    %267 = vmatpush1.msra.mxu0 0.0
    %268 = vmatprep.subr.mxu0 0.0
    %269 = vmatpush1.msra.mxu0 0.0
    %270 = vmatprep.subr.mxu0 0.0
    %271 = vmatpush1.msra.mxu0 0.0
    %272 = vmatprep.subr.mxu0 0.0
    %273 = vmatpush1.msra.mxu0 0.0
    %274 = vmatprep.subr.mxu0 0.0
    %275 = vmatpush1.msra.mxu0 0.0
    %276 = vmatprep.subr.mxu0 0.0
    %277 = vmatpush1.msra.mxu0 0.0
    %278 = vmatprep.subr.mxu0 0.0
    %279 = vmatpush1.msra.mxu0 0.0
    %280 = vmatprep.mubr.f32.mxu0 0.0
    %281 = vmatmul.mubr.f32.gmra.mrb[0].mxu0 %v214
    %v282 = vpop.f32.mrb[0].mxu0
    %v283 = vadd.f32 0.0, %v282
    %v284 = vpop.f32.mrb[0].mxu0
    %285 = vdwg.mxu0
    %v286 = vrcp.pop %v283
    %v287 = vmul.f32 %v210, %v286
    %288 = vst.msk [vmem:[#allocation2] sm:$0xff] %vm204, %v287
    // Predicated region
    $region26: #{tpu_custom_call.1} parent=1 // pred_check
      _
    $region27: #{tpu_custom_call.1} parent=1 // pred_check_branch
      %290 = sbr.rel (0) target = $region29
    $region28: #{tpu_custom_call.1} parent=1 // pred_region
      %s292 = ssub.s32 128, 128
      %293 = vsyncadd [#allocation3], %s292
      %s295 = sshll.u32 [#allocation2], 4
      %s296 = int_to_ptr.vmem [resolvable:$true] %s295
      %298 = dma.vmem_to_hbm [thread:$0]  %s296, 128, %s6, [#allocation3]
    $region29: #{tpu_custom_call.1} parent=1 // pred_fallthru
      _
    // Predicated region
    $region30: #{tpu_custom_call.1} parent=1 // pred_check
      _
    $region31: #{tpu_custom_call.1} parent=1 // pred_check_branch
      %300 = sbr.rel (0) target = $region33
    $region32: #{tpu_custom_call.1} parent=1 // pred_region
      %301 = dma.done [#allocation3], 128
    $region33: #{tpu_custom_call.1} parent=1 // pred_fallthru
      _
    %302 = vsyncpa [#allocation3], 1

</llo_original>
